<compile_context>
chip_gen: v6e
topology: v6e:2x2x1
jax: 0.10.0
libtpu: 0.0.40
codegen_flags: <defaults>
</compile_context>

<pallas_src>
import functools

import jax
import jax.numpy as jnp
from jax.experimental import pallas as pl
from jax.experimental.pallas import tpu as pltpu


# --------------------------------------------------------------------------
# Kernel bodies
# --------------------------------------------------------------------------
def _ln_body(x_ref, w_ref, b_ref, o_ref, *, transpose_out):
    """Shared LayerNorm body.  b_ref may be None (BiasFree variant)."""
    x = x_ref[...].astype(jnp.float32)                 # (C, T)
    mu = jnp.mean(x, axis=0, keepdims=True)            # (1, T)
    xm = x - mu
    var = jnp.mean(xm * xm, axis=0, keepdims=True)     # unbiased=False
    rstd = jax.lax.rsqrt(var + jnp.float32(1e-5))
    w = w_ref[...].astype(jnp.float32)                 # (C, 1)
    if b_ref is not None:
        b = b_ref[...].astype(jnp.float32)             # (C, 1)
        y = xm * rstd * w + b
    else:
        # BiasFree: x itself is NOT mean-centered, but the variance is
        # (matches torch.var semantics of the PyTorch module).
        y = x * rstd * w
    if transpose_out:
        y = y.T                                        # (T, C) -- XLU transpose
    o_ref[...] = y.astype(o_ref.dtype)


def _withbias_kernel(x_ref, w_ref, b_ref, o_ref, *, transpose_out):
    _ln_body(x_ref, w_ref, b_ref, o_ref, transpose_out=transpose_out)


def _biasfree_kernel(x_ref, w_ref, o_ref, *, transpose_out):
    _ln_body(x_ref, w_ref, None, o_ref, transpose_out=transpose_out)


# --------------------------------------------------------------------------
# Budgeting / tiling helpers (all trace-time Python)
# --------------------------------------------------------------------------
def _cdiv(a, b):
    return (a + b - 1) // b


def _round_up(a, m):
    return _cdiv(a, m) * m


@functools.lru_cache(maxsize=1)
def _vmem_capacity_bytes():
    try:
        return int(pltpu.get_tpu_info().vmem_capacity_bytes)
    except Exception:
        return 128 * 1024 * 1024   # conservative v5e/v6e default


def _derive_budget(itemsize, block_bytes):
    """Return (per-block byte budget, vmem_limit_bytes for Mosaic).

    The real working set per grid step is ~2 input buffers + 2 output buffers
    plus the f32 intermediates, so the per-block budget is the VMEM window
    divided by ~6 (f32 input) or ~8 (narrow input whose f32 temps dominate).
    """
    cap = _vmem_capacity_bytes()
    factor = 6 if itemsize >= 4 else 8
    if block_bytes is None:
        # <= ~60% of per-core VMEM, never more than 48 MiB (v7x has 64 MiB).
        vmem_limit = min(cap * 3 // 5, 48 * 1024 * 1024)
        block_bytes = max(128 * 1024, vmem_limit // factor)
    else:
        vmem_limit = min(max(16 * 1024 * 1024, block_bytes * factor),
                         cap * 3 // 4)
    return int(block_bytes), int(vmem_limit)


def _pick_tile_s(S, C, itemsize, block_bytes, B):
    """Largest lane-dense tile (multiple of 128) within the per-block budget,
    then capped (never below 512 lanes) so the grid has >= ~8 steps for
    megacore sharding + pipeline overlap on v7x."""
    s_pad = _round_up(S, 128)
    tile = (block_bytes // max(C * itemsize, 1)) // 128 * 128
    tile = max(128, min(tile, s_pad))
    if tile >= S:
        tile = S               # whole spatial slab: one contiguous DMA / step
    MIN_STEPS = 8              # >= ~4 steps per TensorCore on a 2-TC chip
    MIN_TILE = min(512, s_pad)
    if B * _cdiv(S, tile) < MIN_STEPS and tile > MIN_TILE:
        blocks_per_batch = _cdiv(MIN_STEPS, B)
        cand = _round_up(_cdiv(S, blocks_per_batch), 128)
        tile = max(min(tile, cand), MIN_TILE)
        if tile >= S:
            tile = S
    return tile


# --------------------------------------------------------------------------
# pallas_call wrapper
# --------------------------------------------------------------------------
def _run_ln(x3, weight, bias, *, fuse_transpose, block_bytes):
    """x3: (B, C, S) NCHW-derived layout; normalize over C per (b, s)."""
    B, C, S = x3.shape
    itemsize = jnp.dtype(x3.dtype).itemsize
    block_bytes, vmem_limit = _derive_budget(itemsize, block_bytes)
    tile_s = _pick_tile_s(S, C, itemsize, block_bytes, B)
    grid = (B, pl.cdiv(S, tile_s))       # ragged last block handled by Pallas

    x_spec = pl.BlockSpec((None, C, tile_s), lambda bi, si: (bi, 0, si))
    p_spec = pl.BlockSpec((C, 1), lambda bi, si: (0, 0))
    if fuse_transpose:
        out_shape = jax.ShapeDtypeStruct((B, S, C), x3.dtype)
        o_spec = pl.BlockSpec((None, tile_s, C), lambda bi, si: (bi, si, 0))
    else:
        out_shape = jax.ShapeDtypeStruct((B, C, S), x3.dtype)
        o_spec = pl.BlockSpec((None, C, tile_s), lambda bi, si: (bi, 0, si))

    cparams = pltpu.CompilerParams(
        dimension_semantics=("parallel", "parallel"),
        vmem_limit_bytes=vmem_limit,
    )

    w2 = weight.reshape(C, 1)
    if bias is not None:
        kernel = functools.partial(_withbias_kernel,
                                   transpose_out=fuse_transpose)
        return pl.pallas_call(
            kernel,
            out_shape=out_shape,
            grid=grid,
            in_specs=[x_spec, p_spec, p_spec],
            out_specs=o_spec,
            compiler_params=cparams,
        )(x3, w2, bias.reshape(C, 1))
    kernel = functools.partial(_biasfree_kernel, transpose_out=fuse_transpose)
    return pl.pallas_call(
        kernel,
        out_shape=out_shape,
        grid=grid,
        in_specs=[x_spec, p_spec],
        out_specs=o_spec,
        compiler_params=cparams,
    )(x3, w2)


@functools.partial(
    jax.jit, static_argnames=("layernorm_type", "return_to_4d", "block_bytes"))
def layernorm_forward(x, weight, bias=None, *, layernorm_type="WithBias",
                      return_to_4d=False, block_bytes=None):
    """Equivalent of LayerNorm(dim, LayerNorm_type, return_to_4d).forward(x).

    x: (b, c, h, w) -> (b, h*w, c)  [or (b, c, h, w) if return_to_4d].
    """
    b, c, h, w = x.shape
    x3 = x.reshape(b, c, h * w)                        # free reshape
    with_bias = layernorm_type != "BiasFree"
    eff_bias = bias if with_bias else None
    # Fuse the (b, c, hw) -> (b, hw, c) transpose into the kernel only when
    # the channel axis keeps output stores lane-dense.
    fuse = (not return_to_4d) and (c % 128 == 0)
    y = _run_ln(x3, weight, eff_bias, fuse_transpose=fuse,
                block_bytes=block_bytes)
    if return_to_4d:
        return y.reshape(b, c, h, w)                   # free reshape
    if fuse:
        return y                                       # already (b, hw, c)
    # Small-C fallback: one XLA layout pass after the kernel.
    return jnp.transpose(y, (0, 2, 1))


# --------------------------------------------------------------------------
# Reference + tests
# --------------------------------------------------------------------------
def _reference(x, weight, bias, layernorm_type, return_to_4d):
    b, c, h, w = x.shape
    x3 = jnp.transpose(x, (0, 2, 3, 1)).reshape(b, h * w, c).astype(jnp.float32)
    mu = jnp.mean(x3, axis=-1, keepdims=True)
    var = jnp.mean((x3 - mu) ** 2, axis=-1, keepdims=True)
    if layernorm_type == "BiasFree":
        y = x3 / jnp.sqrt(var + 1e-5) * weight
    else:
        y = (x3 - mu) / jnp.sqrt(var + 1e-5) * weight + bias
    if return_to_4d:
        y = jnp.transpose(y.reshape(b, h, w, c), (0, 3, 1, 2))
    return y


if __name__ == "__main__":
    key = jax.random.PRNGKey(0)
    k1, k2, k3, k4, k5, k6, k7 = jax.random.split(key, 7)

    # --- 1) Default path: small shape, WithBias, (b, h*w, c) output ----------
    b, c, h, w = 2, 4, 16, 16
    x = jax.random.normal(k1, (b, c, h, w), dtype=jnp.float32)
    weight = 1.0 + 0.1 * jax.random.normal(k2, (c,), dtype=jnp.float32)
    bias = 0.1 * jax.random.normal(k3, (c,), dtype=jnp.float32)

    out = layernorm_forward(x, weight, bias,
                            layernorm_type="WithBias", return_to_4d=False)
    out = jax.block_until_ready(out)
    ref = _reference(x, weight, bias, "WithBias", False)
    assert out.shape == (b, h * w, c), out.shape
    assert jnp.max(jnp.abs(out - ref)) < 1e-4

    # --- 2) BiasFree variant with return_to_4d=True (zero transposes) --------
    out_bf = layernorm_forward(x, weight, bias,
                               layernorm_type="BiasFree", return_to_4d=True)
    out_bf = jax.block_until_ready(out_bf)
    ref_bf = _reference(x, weight, bias, "BiasFree", True)
    assert out_bf.shape == (b, c, h, w), out_bf.shape
    assert jnp.max(jnp.abs(out_bf - ref_bf)) < 1e-4

    # --- 3) Fused in-kernel transpose path: C multiple of 128 ----------------
    c2 = 128
    x2 = jax.random.normal(k4, (2, c2, 16, 16), dtype=jnp.float32)
    w2 = 1.0 + 0.1 * jax.random.normal(k5, (c2,), dtype=jnp.float32)
    b2 = 0.1 * jax.random.normal(k6, (c2,), dtype=jnp.float32)
    out2 = layernorm_forward(x2, w2, b2,
                             layernorm_type="WithBias", return_to_4d=False)
    out2 = jax.block_until_ready(out2)
    ref2 = _reference(x2, w2, b2, "WithBias", False)
    assert out2.shape == (2, 16 * 16, c2), out2.shape
    assert jnp.max(jnp.abs(out2 - ref2)) < 1e-4

    # --- 4) Multi-block spatial grid (forced small tile -> tile_s = 512) -----
    x3t = jax.random.normal(k7, (2, 4, 32, 32), dtype=jnp.float32)
    out3 = layernorm_forward(x3t, weight, bias,
                             layernorm_type="WithBias", return_to_4d=False,
                             block_bytes=512 * 4 * 4)
    out3 = jax.block_until_ready(out3)
    ref3 = _reference(x3t, weight, bias, "WithBias", False)
    assert out3.shape == (2, 32 * 32, 4), out3.shape
    assert jnp.max(jnp.abs(out3 - ref3)) < 1e-4

    print("KERNEL_OK")
</pallas_src>

<mosaic_0001>
module attributes {stable_mosaic.version = 11 : i64} {
  func.func @_withbias_kernel(%arg0: i32, %arg1: i32, %arg2: memref<1x4x256xf32, #tpu.memory_space<vmem>>, %arg3: memref<4x1xf32, #tpu.memory_space<vmem>>, %arg4: memref<4x1xf32, #tpu.memory_space<vmem>>, %arg5: memref<1x4x256xf32, #tpu.memory_space<vmem>>) attributes {dimension_semantics = [#tpu.dimension_semantics<parallel>, #tpu.dimension_semantics<parallel>], iteration_bounds = array<i64: 2, 1>, scalar_prefetch = 0 : i64, scratch_operands = 0 : i64, tpu.core_type = #tpu.core_type<tc>, window_params = [{transform_indices = @transform_0, window_bounds = array<i64: 1, 4, 256>}, {pipeline_mode = #tpu.pipeline_mode<synchronous>, transform_indices = @transform_1, window_bounds = array<i64: 4, 1>}, {pipeline_mode = #tpu.pipeline_mode<synchronous>, transform_indices = @transform_2, window_bounds = array<i64: 4, 1>}, {transform_indices = @transform_3, window_bounds = array<i64: 1, 4, 256>}]} {
    %c0 = arith.constant 0 : index
    %c0_0 = arith.constant 0 : index
    %c0_1 = arith.constant 0 : index
    %0 = vector.load %arg2[%c0, %c0_0, %c0_1] : memref<1x4x256xf32, #tpu.memory_space<vmem>>, vector<1x4x256xf32>
    %1 = vector.shape_cast %0 : vector<1x4x256xf32> to vector<4x256xf32>
    %cst = arith.constant dense<0.000000e+00> : vector<256xf32>
    %2 = vector.multi_reduction <add>, %1, %cst [0] : vector<4x256xf32> to vector<256xf32>
    %3 = vector.shape_cast %2 : vector<256xf32> to vector<1x256xf32>
    %cst_2 = arith.constant 4.000000e+00 : f32
    %4 = vector.broadcast %cst_2 : f32 to vector<1x256xf32>
    %5 = arith.divf %3, %4 : vector<1x256xf32>
    %6 = vector.broadcast %5 : vector<1x256xf32> to vector<4x256xf32>
    %7 = arith.subf %1, %6 : vector<4x256xf32>
    %8 = arith.mulf %7, %7 : vector<4x256xf32>
    %cst_3 = arith.constant dense<0.000000e+00> : vector<256xf32>
    %9 = vector.multi_reduction <add>, %8, %cst_3 [0] : vector<4x256xf32> to vector<256xf32>
    %10 = vector.shape_cast %9 : vector<256xf32> to vector<1x256xf32>
    %cst_4 = arith.constant 4.000000e+00 : f32
    %11 = vector.broadcast %cst_4 : f32 to vector<1x256xf32>
    %12 = arith.divf %10, %11 : vector<1x256xf32>
    %cst_5 = arith.constant 9.99999974E-6 : f32
    %13 = vector.broadcast %cst_5 : f32 to vector<1x256xf32>
    %14 = arith.addf %12, %13 : vector<1x256xf32>
    %15 = math.rsqrt %14 : vector<1x256xf32>
    %c0_6 = arith.constant 0 : index
    %c0_7 = arith.constant 0 : index
    %16 = vector.load %arg3[%c0_6, %c0_7] : memref<4x1xf32, #tpu.memory_space<vmem>>, vector<4x1xf32>
    %c0_8 = arith.constant 0 : index
    %c0_9 = arith.constant 0 : index
    %17 = vector.load %arg4[%c0_8, %c0_9] : memref<4x1xf32, #tpu.memory_space<vmem>>, vector<4x1xf32>
    %18 = vector.broadcast %15 : vector<1x256xf32> to vector<4x256xf32>
    %19 = arith.mulf %7, %18 : vector<4x256xf32>
    %20 = vector.broadcast %16 : vector<4x1xf32> to vector<4x256xf32>
    %21 = arith.mulf %19, %20 : vector<4x256xf32>
    %22 = vector.broadcast %17 : vector<4x1xf32> to vector<4x256xf32>
    %23 = arith.addf %21, %22 : vector<4x256xf32>
    %c0_10 = arith.constant 0 : index
    %c0_11 = arith.constant 0 : index
    %c0_12 = arith.constant 0 : index
    %24 = vector.load %arg5[%c0_10, %c0_11, %c0_12] : memref<1x4x256xf32, #tpu.memory_space<vmem>>, vector<1x4x256xf32>
    %25 = vector.shape_cast %24 : vector<1x4x256xf32> to vector<4x256xf32>
    %26 = vector.shape_cast %23 : vector<4x256xf32> to vector<1x4x256xf32>
    tpu.vector_store %arg5[%c0_10, %c0_11, %c0_12], %26 {strides = array<i32>} : memref<1x4x256xf32, #tpu.memory_space<vmem>>, vector<1x4x256xf32>,
    return
  }
  func.func @transform_0(%arg0: i32, %arg1: i32) -> (i32, i32, i32) {
    %c0_i32 = arith.constant 0 : i32
    %c0_i32_0 = arith.constant 0 : i32
    return %arg0, %c0_i32, %arg1 : i32, i32, i32
  }
  func.func @transform_1(%arg0: i32, %arg1: i32) -> (i32, i32) {
    %c0_i32 = arith.constant 0 : i32
    %c0_i32_0 = arith.constant 0 : i32
    %c0_i32_1 = arith.constant 0 : i32
    return %c0_i32, %c0_i32_0 : i32, i32
  }
  func.func @transform_2(%arg0: i32, %arg1: i32) -> (i32, i32) {
    %c0_i32 = arith.constant 0 : i32
    %c0_i32_0 = arith.constant 0 : i32
    %c0_i32_1 = arith.constant 0 : i32
    return %c0_i32, %c0_i32_0 : i32, i32
  }
  func.func @transform_3(%arg0: i32, %arg1: i32) -> (i32, i32, i32) {
    %c0_i32 = arith.constant 0 : i32
    %c0_i32_0 = arith.constant 0 : i32
    return %arg0, %c0_i32, %arg1 : i32, i32, i32
  }
}

</mosaic_0001>

<llo_original>
// kernel: layernorm_forward.1
$region0: #{layernorm_forward.1}
  #allocation0 [shape = 'u32[]', space=smem, size = 0x4, offset = 0x4, fixed_abs, tag = 'smem constant byte address 0x4 - core index']
  #allocation1 [shape = 'u32[144,128]{1,0:T(1,128)}', space=vmem, size = 0x12000, scoped, tag = 'internal scratch']
  %s0 = inlined_call_operand.vmem [shape: f32[2,4,256], index: 0, kind: input, shape index: {}]
  %s1 = inlined_call_operand.vmem [shape: f32[4,1], index: 1, kind: input, shape index: {}]
  %s2 = inlined_call_operand.vmem [shape: f32[4,1], index: 2, kind: input, shape index: {}]
  %s3 = inlined_call_operand.hbm [shape: f32[2,4,256], index: 3, kind: output, shape index: {}]
  %s4 = sld [smem:[#allocation0]]
  $region45: #{layernorm_forward.1} parent=0
    _
  %s6 = ssub.s32 1, %s4
  %s7 = scalar_select 0, %s6, %s4
  $region1: #{layernorm_forward.1} parent=0
    #allocation2 [shape = 'u8[8192]{0}', space=vmem, size = 0x2000, scoped, tag = 'output window, operand 0']
    #allocation3 [shape = 's32[2]{0}', space=sflag, size = 0x8, scoped, tag = 'scoped memory for layernorm_forward.1']
    %8 = vsyncpa [#allocation3], 0
    %s9 = scalar_lea.sflag [#allocation3], 1
    %10 = vsyncpa %s9, 0
    loop: start=0, step=1, limit=4
    $region2: #{layernorm_forward.1} parent=1 // loop_pre_header
      _
    $region3: #{layernorm_forward.1} parent=1 // loop_header
      %s12 = sphi 0, %s16
      %p13 = scmp.ge.s32.totalorder %s12, 4
      %s19 = sphi 0, %s31
      %s20 = sphi 0, %s27
      %s21 = sphi 0, %s19
      %s22 = sphi 0, %s20
      %s23 = sphi 0, %s21
      %s24 = sphi 0, %s22
      %s36 = sphi 0, %s38
      %s39 = sphi 0, %s36
      %s40 = sphi 0, %s39
      %s56 = sphi 0, %s40
      %s60 = sphi 0, %s60
      %s62 = sphi 0, %s60
      %s63 = sphi 0, %s62
      %s77 = sphi 0, %s63
      %s81 = sphi 0, %s81
      %s83 = sphi 0, %s81
      %s84 = sphi 0, %s83
      %s98 = sphi 0, %s84
      %s106 = sphi 0, %s108
      %s109 = sphi 0, %s106
      %s110 = sphi 0, %s109
      %s126 = sphi 0, %s110
    $region4: #{layernorm_forward.1} parent=1 // loop_header_branch
      %15 = sbr.rel (%p13) target = $region8
    $region5: #{layernorm_forward.1} parent=1 // loop_body
      %s17 = ssub.s32 %s12, 1
      %s18 = ssub.s32 %s12, 2
      %s25 = sadd.s32 1, %s20
      %p26 = scmp.ge.s32.totalorder %s25, 1
      %s27 = scalar_select %p26, 0, %s25
      %s28 = sadd.s32 1, %s19
      %s29 = scalar_select %p26, %s28, %s19
      %p30 = scmp.ge.s32.totalorder %s29, 2
      %s31 = scalar_select %p30, 0, %s29
      %s32 = ssub.s32 %s19, %s31
      %s33 = ssub.s32 %s20, %s27
      %s34 = sor.u32 %s32, %s33
      %p35 = scmp.eq.s32.totalorder %s34, 0
      %s37 = sadd.s32 %s36, 1
      %s38 = scalar_select %p35, %s36, %s37
      %p41 = pneg %p35
      %p42 = scmp.eq.s32.totalorder %s12, 1
      %p43 = por %p41, %p42
      %p44 = scmp.ne.s32.totalorder %s36, %s39
      %p45 = scmp.eq.s32.totalorder %s12, 0
      %p46 = por %p44, %p45
      %p47 = scmp.ne.s32.totalorder %s36, %s39
      %p48 = scmp.eq.s32.totalorder %s17, 1
      %p49 = por %p47, %p48
      %p50 = scmp.ne.s32.totalorder %s39, %s40
      %p51 = scmp.eq.s32.totalorder %s17, 0
      %p52 = por %p50, %p51
      %p53 = scmp.ne.s32.totalorder %s39, %s40
      %p54 = scmp.eq.s32.totalorder %s18, 1
      %p55 = por %p53, %p54
      %p57 = scmp.ne.s32.totalorder %s40, %s56
      %p58 = scmp.eq.s32.totalorder %s18, 0
      %p59 = por %p57, %p58
      %s61 = sadd.s32 %s60, 1
      %p64 = scmp.eq.s32.totalorder %s12, 1
      %p65 = scmp.ne.s32.totalorder %s60, %s62
      %p66 = scmp.eq.s32.totalorder %s12, 0
      %p67 = por %p65, %p66
      %p68 = scmp.ne.s32.totalorder %s60, %s62
      %p69 = scmp.eq.s32.totalorder %s17, 1
      %p70 = por %p68, %p69
      %p71 = scmp.ne.s32.totalorder %s62, %s63
      %p72 = scmp.eq.s32.totalorder %s17, 0
      %p73 = por %p71, %p72
      %p74 = scmp.ne.s32.totalorder %s62, %s63
      %p75 = scmp.eq.s32.totalorder %s18, 1
      %p76 = por %p74, %p75
      %p78 = scmp.ne.s32.totalorder %s63, %s77
      %p79 = scmp.eq.s32.totalorder %s18, 0
      %p80 = por %p78, %p79
      %s82 = sadd.s32 %s81, 1
      %p85 = scmp.eq.s32.totalorder %s12, 1
      %p86 = scmp.ne.s32.totalorder %s81, %s83
      %p87 = scmp.eq.s32.totalorder %s12, 0
      %p88 = por %p86, %p87
      %p89 = scmp.ne.s32.totalorder %s81, %s83
      %p90 = scmp.eq.s32.totalorder %s17, 1
      %p91 = por %p89, %p90
      %p92 = scmp.ne.s32.totalorder %s83, %s84
      %p93 = scmp.eq.s32.totalorder %s17, 0
      %p94 = por %p92, %p93
      %p95 = scmp.ne.s32.totalorder %s83, %s84
      %p96 = scmp.eq.s32.totalorder %s18, 1
      %p97 = por %p95, %p96
      %p99 = scmp.ne.s32.totalorder %s84, %s98
      %p100 = scmp.eq.s32.totalorder %s18, 0
      %p101 = por %p99, %p100
      %s102 = ssub.s32 %s19, %s31
      %s103 = ssub.s32 %s20, %s27
      %s104 = sor.u32 %s102, %s103
      %p105 = scmp.eq.s32.totalorder %s104, 0
      %s107 = sadd.s32 %s106, 1
      %s108 = scalar_select %p105, %s106, %s107
      %p111 = pneg %p105
      %p112 = scmp.eq.s32.totalorder %s12, 1
      %p113 = por %p111, %p112
      %p114 = scmp.ne.s32.totalorder %s106, %s109
      %p115 = scmp.eq.s32.totalorder %s12, 0
      %p116 = por %p114, %p115
      %p117 = scmp.ne.s32.totalorder %s106, %s109
      %p118 = scmp.eq.s32.totalorder %s17, 1
      %p119 = por %p117, %p118
      %p120 = scmp.ne.s32.totalorder %s109, %s110
      %p121 = scmp.eq.s32.totalorder %s17, 0
      %p122 = por %p120, %p121
      %p123 = scmp.ne.s32.totalorder %s109, %s110
      %p124 = scmp.eq.s32.totalorder %s18, 1
      %p125 = por %p123, %p124
      %p127 = scmp.ne.s32.totalorder %s110, %s126
      %p128 = scmp.eq.s32.totalorder %s18, 0
      %p129 = por %p127, %p128
      %p130 = scmp.le.s32.totalorder 1, %s12
      %p131 = scmp.lt.s32.totalorder %s12, 3
      %p132 = pnand %p130, %p131
      %p133 = pneg %p132
      // Predicated region
      $region9: #{layernorm_forward.1} parent=5 // pred_check
        _
      $region10: #{layernorm_forward.1} parent=5 // pred_check_branch
        %135 = sbr.rel (%p132) target = $region12
      $region11: #{layernorm_forward.1} parent=5 // pred_region
        %s136 = ssub.s32 %s12, 1
        // Predicated region
        $region13: #{layernorm_forward.1} parent=11 // pred_check
          %p137 = pneg %p73
        $region14: #{layernorm_forward.1} parent=11 // pred_check_branch
          %139 = sbr.rel (%p137) target = $region16
        $region15: #{layernorm_forward.1} parent=11 // pred_region
          _
        $region16: #{layernorm_forward.1} parent=11 // pred_fallthru
          _
        // Predicated region
        $region17: #{layernorm_forward.1} parent=11 // pred_check
          %p140 = pneg %p94
        $region18: #{layernorm_forward.1} parent=11 // pred_check_branch
          %142 = sbr.rel (%p140) target = $region20
        $region19: #{layernorm_forward.1} parent=11 // pred_region
          _
        $region20: #{layernorm_forward.1} parent=11 // pred_fallthru
          _
      $region12: #{layernorm_forward.1} parent=5 // pred_fallthru
        _
      %p143 = scmp.lt.s32.totalorder %s12, 2
      // Predicated region
      $region21: #{layernorm_forward.1} parent=5 // pred_check
        %p144 = pneg %p143
      $region22: #{layernorm_forward.1} parent=5 // pred_check_branch
        %146 = sbr.rel (%p144) target = $region24
      $region23: #{layernorm_forward.1} parent=5 // pred_region
        // Predicated region
        $region25: #{layernorm_forward.1} parent=23 // pred_check
          %p147 = pneg %p46
        $region26: #{layernorm_forward.1} parent=23 // pred_check_branch
          %149 = sbr.rel (%p147) target = $region28
        $region27: #{layernorm_forward.1} parent=23 // pred_region
          %s150 = smul.u32 2, %s20
          %p151 = scmp.lt.s32.totalorder %s19, 1
          %s152 = scalar_select %p151, %s19, 1
          %p153 = scmp.lt.s32.totalorder %s150, 1
          %s154 = scalar_select %p153, %s150, 1
          %s155 = smul.addr %s152, 2
          %s156 = sadd.s32 %s154, %s155
          %s157 = smul.addr %s156, 4
          %s158 = scalar_lea.vmem %s0, %s157
          %s159 = smul.u32 2, %s20
        $region28: #{layernorm_forward.1} parent=23 // pred_fallthru
          _
      $region24: #{layernorm_forward.1} parent=5 // pred_fallthru
        _
      %p160 = scmp.le.s32.totalorder 1, %s12
      %p161 = scmp.lt.s32.totalorder %s12, 3
      %p162 = pnand %p160, %p161
      %p163 = pneg %p162
      // Predicated region
      $region29: #{layernorm_forward.1} parent=5 // pred_check
        _
      $region30: #{layernorm_forward.1} parent=5 // pred_check_branch
        %165 = sbr.rel (%p162) target = $region32
      $region31: #{layernorm_forward.1} parent=5 // pred_region
        %s166 = ssub.s32 %s12, 1
        %s167 = smul.u32 2, %s22
        %p168 = scmp.lt.s32.totalorder %s21, 1
        %s169 = scalar_select %p168, %s21, 1
        %p170 = scmp.lt.s32.totalorder %s167, 1
        %s171 = scalar_select %p170, %s167, 1
        %s172 = smul.addr %s169, 2
        %s173 = sadd.s32 %s171, %s172
        %s174 = smul.addr %s173, 4
        %s175 = scalar_lea.vmem %s0, %s174
        %p176 = pneg %p52
        %p177 = pneg %p49
        %p178 = pneg %p73
        %p179 = pneg %p70
        %p180 = pneg %p94
        %p181 = pneg %p91
        %p182 = pneg %p122
        %p183 = pneg %p119
        %s184 = sand.u32 %s109, 1
        %s185 = scalar_lea.sflag [#allocation3], %s184
        %s186 = sand.u32 %s109, 1
        %s187 = smul.addr %s186, 8
        %s188 = scalar_lea.vmem [#allocation2], %s187
        %s189 = smul.u32 2, %s22
        %p190 = scmp.lt.s32.totalorder %s21, 1
        %s191 = scalar_select %p190, %s21, 1
        %p192 = scmp.lt.s32.totalorder %s189, 1
        %s193 = scalar_select %p192, %s189, 1
        %s194 = smul.addr %s191, 2
        %s195 = sadd.s32 %s193, %s194
        %s196 = smul.addr %s195, 4
        %s197 = scalar_lea.vmem %s0, %s196
        %s198 = smul.u32 2, %s22
        %s199 = smul.u32 2, %s22
        %v200 = vld [vmem:[%s197] sm:$0xff]
        %v202 = vcombine.high %v200, %v200
        %vm204 = vcmask 1043456
        %v205 = vsel %vm204, %v200, 0.0
        %v206 = vrot.slane %v205, 4
        %v207 = vadd.f32 %v205, %v206
        %v208 = vrot.slane %v207, 2
        %v209 = vadd.f32 %v207, %v208
        %v210 = vrot.slane %v209, 1
        %v211 = vadd.f32 %v209, %v210
        %v212 = vsel %vm204, %v202, 0.0
        %v213 = vrot.slane %v212, 4
        %v214 = vadd.f32 %v212, %v213
        %v215 = vrot.slane %v214, 2
        %v216 = vadd.f32 %v214, %v215
        %v217 = vrot.slane %v216, 1
        %v218 = vadd.f32 %v216, %v217
        %v219 = vrcp.pop 4.0
        %v220 = vmul.f32 %v211, %v219
        %v221 = vmul.f32 %v218, %v219
        %v224 = vcombine.low %v220, %v221
        %v226 = vsub.f32 %v200, %v224
        %v227 = vmul.f32 %v226, %v226
        %v229 = vcombine.high %v227, %v227
        %v231 = vsel %vm204, %v227, 0.0
        %v232 = vrot.slane %v231, 4
        %v233 = vadd.f32 %v231, %v232
        %v234 = vrot.slane %v233, 2
        %v235 = vadd.f32 %v233, %v234
        %v236 = vrot.slane %v235, 1
        %v237 = vadd.f32 %v235, %v236
        %v238 = vsel %vm204, %v229, 0.0
        %v239 = vrot.slane %v238, 4
        %v240 = vadd.f32 %v238, %v239
        %v241 = vrot.slane %v240, 2
        %v242 = vadd.f32 %v240, %v241
        %v243 = vrot.slane %v242, 1
        %v244 = vadd.f32 %v242, %v243
        %v245 = vmul.f32 %v237, %v219
        %v246 = vmul.f32 %v244, %v219
        %v247 = vadd.f32 %v245, 1e-05
        %v248 = vadd.f32 %v246, 1e-05
        %v249 = vrsqrt.pop %v247
        %v250 = vrsqrt.pop %v248
        %v251 = vld [vmem:[%s1] sm:$0xf]
        %v252 = vld [vmem:[%s2] sm:$0xf]
        %v255 = vcombine.low %v249, %v250
        %v257 = vmul.f32 %v226, %v255
        %259 = vset.pattern.permute.xlu0 0
        %260 = vperm.xlu0 %259, %v251
        %v261 = vpop.permute.xlu0 %260
        %v263 = vunpack.c.l.s4 839922192
        %v264 = vunpack.c.0.s8 %v263
        %v265 = vlaneseq
        %v266 = vshrl.u32 %v265, 7
        %v267 = vsub.s32 %v264, %v266
        %v268 = vrot.slane %v261, %v267
        %v270 = vmul.f32 %v257, %v268
        %272 = vset.pattern.permute.xlu0 0
        %273 = vperm.xlu0 %272, %v252
        %v274 = vpop.permute.xlu0 %273
        %v276 = vunpack.c.l.s4 839922192
        %v277 = vunpack.c.0.s8 %v276
        %v278 = vlaneseq
        %v279 = vshrl.u32 %v278, 7
        %v280 = vsub.s32 %v277, %v279
        %v281 = vrot.slane %v274, %v280
        %v283 = vadd.f32 %v270, %v281
        %284 = vst [vmem:[%s188] sm:$0xff] %v283
        %s285 = sand.u32 %s109, 1
        %s286 = scalar_lea.sflag [#allocation3], %s285
        %s287 = sand.u32 %s109, 1
        %s288 = smul.addr %s287, 8
        %s289 = scalar_lea.vmem [#allocation2], %s288
        // Predicated region
        $region33: #{layernorm_forward.1} parent=31 // pred_check
          %p290 = pneg %p119
        $region34: #{layernorm_forward.1} parent=31 // pred_check_branch
          %292 = sbr.rel (%p290) target = $region36
        $region35: #{layernorm_forward.1} parent=31 // pred_region
          %s293 = smul.u32 2, %s22
          %s295 = ssub.s32 128, 128
          %296 = vsyncadd %s286, %s295
          %s297 = smul.addr %s21, 2
          %s298 = sadd.s32 %s293, %s297
          %s299 = smul.addr %s298, 64
          %s300 = scalar_lea.hbm %s3, %s299
          %s302 = sshll.u32 %s289, 4
          %s303 = int_to_ptr.vmem [resolvable:$true] %s302
          %305 = dma.vmem_to_hbm [thread:$0]  %s303, 128, %s300, %s286
        $region36: #{layernorm_forward.1} parent=31 // pred_fallthru
          _
      $region32: #{layernorm_forward.1} parent=5 // pred_fallthru
        _
      %p306 = scmp.le.s32.totalorder 2, %s12
      // Predicated region
      $region37: #{layernorm_forward.1} parent=5 // pred_check
        %p307 = pneg %p306
      $region38: #{layernorm_forward.1} parent=5 // pred_check_branch
        %309 = sbr.rel (%p307) target = $region40
      $region39: #{layernorm_forward.1} parent=5 // pred_region
        %s310 = ssub.s32 %s12, 2
        // Predicated region
        $region41: #{layernorm_forward.1} parent=39 // pred_check
          %p311 = pneg %p125
        $region42: #{layernorm_forward.1} parent=39 // pred_check_branch
          %313 = sbr.rel (%p311) target = $region44
        $region43: #{layernorm_forward.1} parent=39 // pred_region
          %s314 = sand.u32 %s110, 1
          %s315 = scalar_lea.sflag [#allocation3], %s314
          %s316 = sand.u32 %s110, 1
          %s317 = smul.addr %s316, 8
          %s318 = scalar_lea.vmem [#allocation2], %s317
          %319 = dma.done %s315, 128
        $region44: #{layernorm_forward.1} parent=39 // pred_fallthru
          _
      $region40: #{layernorm_forward.1} parent=5 // pred_fallthru
        _
    $region6: #{layernorm_forward.1} parent=1 // loop_footer
      %s16 = sadd.s32 1, %s12
    $region7: #{layernorm_forward.1} parent=1 // loop_footer_branch
      %11 = sbr.rel target = $region3
    $region8: #{layernorm_forward.1} parent=1 // loop_exit
      _
    %320 = vsyncpa [#allocation3], 1
    %s321 = scalar_lea.sflag [#allocation3], 1
    %322 = vsyncpa %s321, 1

</llo_original>
